<compile_context>
chip_gen: v6e
topology: v6e:2x2x1
jax: 0.10.0
libtpu: 0.0.40
codegen_flags: <defaults>
</compile_context>

<pallas_src>
import math

import jax
import jax.numpy as jnp
from jax import lax
from jax.experimental import pallas as pl
from jax.experimental.pallas import tpu as pltpu


def _round_up(x, m):
    return -(-x // m) * m


def _vmem_capacity_bytes():
    try:
        return int(pltpu.get_tpu_info().vmem_capacity_bytes)
    except Exception:
        return 64 * 1024 * 1024  # v7x (smallest per-TC VMEM) -> safe fallback everywhere


def _make_kernel(s_pad, with_probs):
    """Log-softmax over aligned groups of `s_pad` lanes of a (rows, C) block."""
    steps = []
    d = 1
    while d < s_pad:
        steps.append(d)
        d *= 2

    def kernel(x_ref, logp_ref, *probs_ref):
        x = x_ref[...].astype(jnp.float32)            # (tr, C); C % 128 == 0, lane-dense
        c = x.shape[-1]

        if steps:
            lane = lax.broadcasted_iota(jnp.int32, x.shape, 1)
            j = lane & (s_pad - 1)                    # position inside the state group

        def group_allreduce(v, op):
            # Butterfly all-reduce inside every aligned group of `s_pad` lanes.  A
            # within-group rotate by d is a full-lane roll by d, with the last d lanes
            # of each group wrapped back in-group via a second roll + select.  The
            # rolls run on the XLU and the select/max/add on the VPU — both have full
            # slack in this HBM-bound kernel, so the per-variable reduction costs no
            # wrapper-side transpose and no extra HBM traffic.
            for d in steps:
                fwd = pltpu.roll(v, shift=c - d, axis=1)        # v[lane + d]
                bwd = pltpu.roll(v, shift=s_pad - d, axis=1)    # v[lane - (s_pad - d)]
                v = op(v, jnp.where(j < s_pad - d, fwd, bwd))
            return v

        m = group_allreduce(x, jnp.maximum)           # per-group max, replicated on lanes
        shifted = x - m
        e = jnp.exp(shifted)                          # EUP
        denom = group_allreduce(e, jnp.add)           # per-group sum(exp), replicated
        logp = shifted - jnp.log(denom)               # Categorical.logits (normalized)
        logp_ref[...] = logp.astype(logp_ref.dtype)
        if with_probs:
            # Reuse `e` (one exp per element instead of a second exp(logp)); the divide
            # lands on VPU slots with slack.  pl.reciprocal(approx=True) is available if
            # ~1e-3 relative error on probs is acceptable.
            probs_ref[0][...] = (e * pl.reciprocal(denom, approx=False)).astype(
                probs_ref[0].dtype)

    return kernel


def _choose_row_tile(rows, lane_c, in_itemsize, out_itemsizes, row_tile):
    """Row tile sized by block *bytes* per TPU generation, VMEM-budget aware."""
    vmem_cap = _vmem_capacity_bytes()
    if vmem_cap <= (64 << 20):          # v7x: 64 MiB VMEM/TC, 3.2 TB/s HBM, 2 TCs
        vmem_limit = 48 << 20
        target_io = 4 << 20
    else:                               # v5e / v6e: 128 MiB VMEM
        vmem_limit = 80 << 20
        target_io = 8 << 20

    if row_tile is not None:
        tr = int(row_tile)
        assert tr >= rows or tr % 32 == 0, "row_tile must be a multiple of 32"
        return min(tr, rows), vmem_limit

    io_per_row = lane_c * (in_itemsize + sum(out_itemsizes))
    # Double-buffered in+out blocks plus ~8 live fp32 temporaries of the block inside
    # the kernel body must stay comfortably under the scoped VMEM limit.
    resident_per_row = 2 * io_per_row + 8 * lane_c * 4
    tr = max(32, (target_io // io_per_row) // 32 * 32)
    tr = min(tr, max(32, ((vmem_limit * 3 // 5) // resident_per_row) // 32 * 32))
    if rows >= 64:
        # Keep >= 2 grid steps so dimension_semantics=("parallel",) actually feeds both
        # v7x TensorCores and BlockSpec double-buffering overlaps DMA with compute.
        tr = min(tr, _round_up(pl.cdiv(rows, 2), 32))
    return min(tr, rows), vmem_limit


def independent_categorical(x, num_vars, num_states, *, with_probs=False,
                            out_dtype=None, probs_dtype=None, row_tile=None):
    """Parameterization of Independent(Categorical(logits=x.reshape(..., V, S)), 1).

    Returns the normalized per-variable log-probs (== Categorical.logits), shape
    x.shape[:-1] + (num_vars, num_states).  With `with_probs=True` also returns
    Categorical.probs.

    dtypes: `out_dtype` defaults to x.dtype (so bf16 logits give bf16 log-probs — pass
    jnp.float32 to keep full precision for a downstream log_prob sum over num_vars).
    `probs_dtype` defaults to bfloat16 to halve the second output's HBM write traffic
    (matters most on v5e); pass jnp.float32 for exact probs.
    """
    assert x.shape[-1] == num_vars * num_states
    batch_shape = x.shape[:-1]
    b_flat = int(math.prod(batch_shape)) if batch_shape else 1

    out_dtype = jnp.dtype(x.dtype) if out_dtype is None else jnp.dtype(out_dtype)
    probs_dtype = jnp.dtype(jnp.bfloat16) if probs_dtype is None else jnp.dtype(probs_dtype)

    s = int(num_states)
    s_pad = max(1, int(pl.next_power_of_2(s)))     # roll-butterfly needs a power of two
    lane_c = max(128, s_pad)                       # row width: multiple of 128 and of s_pad

    # ---- zero-copy packing: contiguous reshapes only, no HBM transpose --------------
    if s_pad != s:
        # Uncommon path (num_states not a power of two): pad the states axis with
        # -FLT_MAX so padded states contribute exp(.)=0 to the softmax; one extra pass.
        fill = (float(jnp.finfo(x.dtype).min)
                if jnp.issubdtype(x.dtype, jnp.floating) else -3.0e38)
        xr = x.reshape((b_flat, num_vars, s))
        xr = jnp.pad(xr, ((0, 0), (0, 0), (0, s_pad - s)), constant_values=fill)
        flat = xr.reshape((-1,))
    else:
        flat = x.reshape((-1,))

    total = flat.shape[0]                          # == b_flat * num_vars * s_pad
    total_pad = _round_up(total, lane_c)
    if total_pad != total:
        # Tiny tail pad, only when B*V*S is not a multiple of 128.  It starts on a
        # state-group boundary, so padded groups are self-contained and never read back.
        flat = jnp.pad(flat, (0, total_pad - total))
    rows = total_pad // lane_c
    packed = flat.reshape((rows, lane_c))          # lane-dense view; state groups are
                                                   # aligned runs of s_pad lanes

    out_itemsizes = [out_dtype.itemsize] + ([probs_dtype.itemsize] if with_probs else [])
    tr, vmem_limit = _choose_row_tile(rows, lane_c, jnp.dtype(x.dtype).itemsize,
                                      out_itemsizes, row_tile)

    grid = (pl.cdiv(rows, tr),)                    # ragged final block is clipped by
                                                   # Pallas (masked store) — no jnp.pad
    blk = pl.BlockSpec((tr, lane_c), lambda i: (i, 0))

    out_shapes = [jax.ShapeDtypeStruct((rows, lane_c), out_dtype)]
    out_specs = [blk]
    if with_probs:
        out_shapes.append(jax.ShapeDtypeStruct((rows, lane_c), probs_dtype))
        out_specs.append(blk)

    results = pl.pallas_call(
        _make_kernel(s_pad, with_probs),
        out_shape=tuple(out_shapes),
        grid_spec=pltpu.PrefetchScalarGridSpec(
            num_scalar_prefetch=0,
            grid=grid,
            in_specs=[blk],
            out_specs=out_specs,
        ),
        compiler_params=pltpu.CompilerParams(
            dimension_semantics=("parallel",),     # shard row tiles across v7x's two TCs
            vmem_limit_bytes=vmem_limit,
        ),
    )(packed)
    if not isinstance(results, (tuple, list)):
        results = (results,)

    out_sh = batch_shape + (num_vars, num_states)

    def _unpack(y):                                # contiguous reshapes / slices only
        yf = y.reshape((-1,))
        if total_pad != total:
            yf = yf[:total]
        if s_pad != s:
            return yf.reshape((b_flat, num_vars, s_pad))[..., :s].reshape(out_sh)
        return yf.reshape(out_sh)

    log_probs = _unpack(results[0])
    if with_probs:
        return log_probs, _unpack(results[1])
    return log_probs


# TODO(synk): the torch.distributions.Independent *object* (sampling, lazy attribute
# machinery, log_prob dispatch) has no Pallas equivalent; only its parameterization
# (normalized log-probs, optional probs) is computed here.  Independent.log_prob is a
# gather + sum over the num_vars axis of these log-probs, done in plain JAX.


if __name__ == "__main__":
    num_vars, num_states = 4, 8
    batch_shape = (2, 4)
    key = jax.random.PRNGKey(0)
    k1, k2, k3 = jax.random.split(key, 3)
    x = jax.random.normal(k1, batch_shape + (num_vars * num_states,), dtype=jnp.float32)

    xr = x.reshape(batch_shape + (num_vars, num_states))
    ref_logp = jax.nn.log_softmax(xr, axis=-1)
    ref_probs = jax.nn.softmax(xr, axis=-1)

    # Default (bandwidth-lean) path: only normalized log-probs.
    logp = jax.block_until_ready(independent_categorical(x, num_vars, num_states))
    assert logp.shape == batch_shape + (num_vars, num_states)
    assert jnp.allclose(logp, ref_logp, atol=1e-5, rtol=1e-5)

    # Full path with fp32 probs for exact comparison.
    logp2, probs32 = independent_categorical(x, num_vars, num_states, with_probs=True,
                                             probs_dtype=jnp.float32)
    jax.block_until_ready(probs32)
    assert jnp.allclose(logp2, ref_logp, atol=1e-5, rtol=1e-5)
    assert jnp.allclose(probs32, ref_probs, atol=1e-5, rtol=1e-5)
    assert jnp.allclose(jnp.sum(probs32, axis=-1), 1.0, atol=1e-5)

    # Default probs dtype is bf16 (HBM-write-lean, esp. on v5e).
    _, probs_bf16 = independent_categorical(x, num_vars, num_states, with_probs=True)
    jax.block_until_ready(probs_bf16)
    assert probs_bf16.dtype == jnp.bfloat16
    assert jnp.allclose(probs_bf16.astype(jnp.float32), ref_probs, atol=1e-2)

    # Ragged / multi-block grid path: 300*32 = 9600 elements -> 75 rows of 128 lanes,
    # grid of 2 with a clipped final block (no jnp.pad round trip).
    batch_shape2 = (3, 100)
    x2 = jax.random.normal(k2, batch_shape2 + (num_vars * num_states,), dtype=jnp.float32)
    logp_b = jax.block_until_ready(independent_categorical(x2, num_vars, num_states))
    ref_b = jax.nn.log_softmax(x2.reshape(batch_shape2 + (num_vars, num_states)), axis=-1)
    assert logp_b.shape == batch_shape2 + (num_vars, num_states)
    assert jnp.allclose(logp_b, ref_b, atol=1e-5, rtol=1e-5)

    # Non-power-of-two num_states (padded-states path through the same kernel).
    nv3, ns3 = 3, 5
    x3 = jax.random.normal(k3, (7, nv3 * ns3), dtype=jnp.float32)
    logp_c = jax.block_until_ready(independent_categorical(x3, nv3, ns3))
    ref_c = jax.nn.log_softmax(x3.reshape((7, nv3, ns3)), axis=-1)
    assert jnp.allclose(logp_c, ref_c, atol=1e-5, rtol=1e-5)

    print("KERNEL_OK")
</pallas_src>

<mosaic_0001>
module attributes {stable_mosaic.version = 11 : i64} {
  func.func @kernel(%arg0: i32, %arg1: memref<2x128xf32, #tpu.memory_space<vmem>>, %arg2: memref<2x128xf32, #tpu.memory_space<vmem>>) attributes {dimension_semantics = [#tpu.dimension_semantics<parallel>], iteration_bounds = array<i64: 1>, scalar_prefetch = 0 : i64, scratch_operands = 0 : i64, tpu.core_type = #tpu.core_type<tc>, window_params = [{transform_indices = @transform_0, window_bounds = array<i64: 2, 128>}, {transform_indices = @transform_1, window_bounds = array<i64: 2, 128>}]} {
    %c0 = arith.constant 0 : index
    %c0_0 = arith.constant 0 : index
    %0 = vector.load %arg1[%c0, %c0_0] : memref<2x128xf32, #tpu.memory_space<vmem>>, vector<2x128xf32>
    %1 = tpu.iota {dimensions = array<i32: 1>} : vector<2x128xi32>
    %c7_i32 = arith.constant 7 : i32
    %2 = vector.broadcast %c7_i32 : i32 to vector<2x128xi32>
    %3 = arith.andi %1, %2 : vector<2x128xi32>
    %c127_i32 = arith.constant 127 : i32
    %4 = tpu.dynamic_rotate %0 by %c127_i32 dim 1 : vector<2x128xf32>, i32 -> vector<2x128xf32>
    %c7_i32_1 = arith.constant 7 : i32
    %5 = tpu.dynamic_rotate %0 by %c7_i32_1 dim 1 : vector<2x128xf32>, i32 -> vector<2x128xf32>
    %c7_i32_2 = arith.constant 7 : i32
    %6 = vector.broadcast %c7_i32_2 : i32 to vector<2x128xi32>
    %7 = arith.cmpi slt, %3, %6 : vector<2x128xi32>
    %8 = arith.select %7, %4, %5 : vector<2x128xi1>, vector<2x128xf32>
    %9 = arith.maximumf %0, %8 : vector<2x128xf32>
    %c126_i32 = arith.constant 126 : i32
    %10 = tpu.dynamic_rotate %9 by %c126_i32 dim 1 : vector<2x128xf32>, i32 -> vector<2x128xf32>
    %c6_i32 = arith.constant 6 : i32
    %11 = tpu.dynamic_rotate %9 by %c6_i32 dim 1 : vector<2x128xf32>, i32 -> vector<2x128xf32>
    %c6_i32_3 = arith.constant 6 : i32
    %12 = vector.broadcast %c6_i32_3 : i32 to vector<2x128xi32>
    %13 = arith.cmpi slt, %3, %12 : vector<2x128xi32>
    %14 = arith.select %13, %10, %11 : vector<2x128xi1>, vector<2x128xf32>
    %15 = arith.maximumf %9, %14 : vector<2x128xf32>
    %c124_i32 = arith.constant 124 : i32
    %16 = tpu.dynamic_rotate %15 by %c124_i32 dim 1 : vector<2x128xf32>, i32 -> vector<2x128xf32>
    %c4_i32 = arith.constant 4 : i32
    %17 = tpu.dynamic_rotate %15 by %c4_i32 dim 1 : vector<2x128xf32>, i32 -> vector<2x128xf32>
    %c4_i32_4 = arith.constant 4 : i32
    %18 = vector.broadcast %c4_i32_4 : i32 to vector<2x128xi32>
    %19 = arith.cmpi slt, %3, %18 : vector<2x128xi32>
    %20 = arith.select %19, %16, %17 : vector<2x128xi1>, vector<2x128xf32>
    %21 = arith.maximumf %15, %20 : vector<2x128xf32>
    %22 = arith.subf %0, %21 : vector<2x128xf32>
    %23 = math.exp %22 : vector<2x128xf32>
    %c127_i32_5 = arith.constant 127 : i32
    %24 = tpu.dynamic_rotate %23 by %c127_i32_5 dim 1 : vector<2x128xf32>, i32 -> vector<2x128xf32>
    %c7_i32_6 = arith.constant 7 : i32
    %25 = tpu.dynamic_rotate %23 by %c7_i32_6 dim 1 : vector<2x128xf32>, i32 -> vector<2x128xf32>
    %c7_i32_7 = arith.constant 7 : i32
    %26 = vector.broadcast %c7_i32_7 : i32 to vector<2x128xi32>
    %27 = arith.cmpi slt, %3, %26 : vector<2x128xi32>
    %28 = arith.select %27, %24, %25 : vector<2x128xi1>, vector<2x128xf32>
    %29 = arith.addf %23, %28 : vector<2x128xf32>
    %c126_i32_8 = arith.constant 126 : i32
    %30 = tpu.dynamic_rotate %29 by %c126_i32_8 dim 1 : vector<2x128xf32>, i32 -> vector<2x128xf32>
    %c6_i32_9 = arith.constant 6 : i32
    %31 = tpu.dynamic_rotate %29 by %c6_i32_9 dim 1 : vector<2x128xf32>, i32 -> vector<2x128xf32>
    %c6_i32_10 = arith.constant 6 : i32
    %32 = vector.broadcast %c6_i32_10 : i32 to vector<2x128xi32>
    %33 = arith.cmpi slt, %3, %32 : vector<2x128xi32>
    %34 = arith.select %33, %30, %31 : vector<2x128xi1>, vector<2x128xf32>
    %35 = arith.addf %29, %34 : vector<2x128xf32>
    %c124_i32_11 = arith.constant 124 : i32
    %36 = tpu.dynamic_rotate %35 by %c124_i32_11 dim 1 : vector<2x128xf32>, i32 -> vector<2x128xf32>
    %c4_i32_12 = arith.constant 4 : i32
    %37 = tpu.dynamic_rotate %35 by %c4_i32_12 dim 1 : vector<2x128xf32>, i32 -> vector<2x128xf32>
    %c4_i32_13 = arith.constant 4 : i32
    %38 = vector.broadcast %c4_i32_13 : i32 to vector<2x128xi32>
    %39 = arith.cmpi slt, %3, %38 : vector<2x128xi32>
    %40 = arith.select %39, %36, %37 : vector<2x128xi1>, vector<2x128xf32>
    %41 = arith.addf %35, %40 : vector<2x128xf32>
    %42 = math.log %41 : vector<2x128xf32>
    %43 = arith.subf %22, %42 : vector<2x128xf32>
    %c0_14 = arith.constant 0 : index
    %c0_15 = arith.constant 0 : index
    %44 = vector.load %arg2[%c0_14, %c0_15] : memref<2x128xf32, #tpu.memory_space<vmem>>, vector<2x128xf32>
    tpu.vector_store %arg2[%c0_14, %c0_15], %43 {strides = array<i32>} : memref<2x128xf32, #tpu.memory_space<vmem>>, vector<2x128xf32>,
    return
  }
  func.func @transform_0(%arg0: i32) -> (i32, i32) {
    %c0_i32 = arith.constant 0 : i32
    %c0_i32_0 = arith.constant 0 : i32
    return %arg0, %c0_i32 : i32, i32
  }
  func.func @transform_1(%arg0: i32) -> (i32, i32) {
    %c0_i32 = arith.constant 0 : i32
    %c0_i32_0 = arith.constant 0 : i32
    return %arg0, %c0_i32 : i32, i32
  }
}

</mosaic_0001>

<llo_original>
// kernel: tpu_custom_call.1
$region0: #{tpu_custom_call.1}
  #allocation0 [shape = 'u32[]', space=smem, size = 0x4, offset = 0x4, fixed_abs, tag = 'smem constant byte address 0x4 - core index']
  #allocation1 [shape = 'u32[144,128]{1,0:T(1,128)}', space=vmem, size = 0x12000, scoped, tag = 'internal scratch']
  %s0 = inlined_call_operand.hbm [shape: f32[2,128], index: 0, kind: input, shape index: {}]
  %s1 = inlined_call_operand.hbm [shape: f32[2,128], index: 1, kind: output, shape index: {}]
  %s2 = sld [smem:[#allocation0]]
  $region18: #{tpu_custom_call.1} parent=0
    _
  %s4 = ssub.s32 1, %s2
  %s5 = scalar_select 0, %s4, %s2
  $region1: #{tpu_custom_call.1} parent=0
    #allocation2 [shape = 'u8[1024]{0}', space=vmem, size = 0x400, scoped, tag = 'input window, operand 0, single buffered']
    #allocation3 [shape = 's32[1]{0}', space=sflag, size = 0x4, scoped, tag = 'scoped memory for tpu_custom_call.1']
    #allocation4 [shape = 's32[1]{0}', space=sflag, size = 0x4, scoped, tag = 'scoped memory for tpu_custom_call.1']
    #allocation5 [shape = 'u8[1024]{0}', space=vmem, size = 0x400, scoped, tag = 'output window, operand 0, single buffered']
    %6 = vsyncpa [#allocation3], 0
    %7 = vsyncpa [#allocation4], 0
    // Predicated region
    $region2: #{tpu_custom_call.1} parent=1 // pred_check
      _
    $region3: #{tpu_custom_call.1} parent=1 // pred_check_branch
      %9 = sbr.rel (0) target = $region5
    $region4: #{tpu_custom_call.1} parent=1 // pred_region
      %s11 = ssub.s32 32, 32
      %12 = vsyncadd [#allocation3], %s11
      %s14 = sshll.u32 [#allocation2], 4
      %s15 = int_to_ptr.vmem [resolvable:$true] %s14
      %17 = dma.hbm_to_vmem [thread:$0]  %s0, 32, %s15, [#allocation3]
    $region5: #{tpu_custom_call.1} parent=1 // pred_fallthru
      _
    // Predicated region
    $region6: #{tpu_custom_call.1} parent=1 // pred_check
      _
    $region7: #{tpu_custom_call.1} parent=1 // pred_check_branch
      %19 = sbr.rel (0) target = $region9
    $region8: #{tpu_custom_call.1} parent=1 // pred_region
      %20 = dma.done [#allocation3], 32
    $region9: #{tpu_custom_call.1} parent=1 // pred_fallthru
      _
    %v21 = vld [vmem:[#allocation2] sm:$0x3]
    %v22 = vlaneseq
    %v23 = vand.u32 %v22, 127
    %v24 = vand.u32 %v23, 7
    %25 = vrot.lane.b32.xlu0 %v21, 127
    %v26 = vpop.permute.xlu0 %25
    %27 = vrot.lane.b32.xlu0 %v21, 7
    %v28 = vpop.permute.xlu0 %27
    %vm29 = vcmp.lt.s32.totalorder %v24, 7
    %v30 = vsel %vm29, %v26, %v28
    %v31 = vmax.f32 %v21, %v30
    %32 = vrot.lane.b32.xlu0 %v31, 126
    %v33 = vpop.permute.xlu0 %32
    %34 = vrot.lane.b32.xlu0 %v31, 6
    %v35 = vpop.permute.xlu0 %34
    %vm36 = vcmp.lt.s32.totalorder %v24, 6
    %v37 = vsel %vm36, %v33, %v35
    %v38 = vmax.f32 %v31, %v37
    %39 = vrot.lane.b32.xlu0 %v38, 124
    %v40 = vpop.permute.xlu0 %39
    %41 = vrot.lane.b32.xlu0 %v38, 4
    %v42 = vpop.permute.xlu0 %41
    %vm43 = vcmp.lt.s32.totalorder %v24, 4
    %v44 = vsel %vm43, %v40, %v42
    %v45 = vmax.f32 %v38, %v44
    %v46 = vsub.f32 %v21, %v45
    %v47 = vmul.f32 %v46, 1.442695
    %v48 = vpow.pop %v47
    %49 = vrot.lane.b32.xlu0 %v48, 127
    %v50 = vpop.permute.xlu0 %49
    %51 = vrot.lane.b32.xlu0 %v48, 7
    %v52 = vpop.permute.xlu0 %51
    %v53 = vsel %vm29, %v50, %v52
    %v54 = vadd.f32 %v48, %v53
    %55 = vrot.lane.b32.xlu0 %v54, 126
    %v56 = vpop.permute.xlu0 %55
    %57 = vrot.lane.b32.xlu0 %v54, 6
    %v58 = vpop.permute.xlu0 %57
    %v59 = vsel %vm36, %v56, %v58
    %v60 = vadd.f32 %v54, %v59
    %61 = vrot.lane.b32.xlu0 %v60, 124
    %v62 = vpop.permute.xlu0 %61
    %63 = vrot.lane.b32.xlu0 %v60, 4
    %v64 = vpop.permute.xlu0 %63
    %v65 = vsel %vm43, %v62, %v64
    %v66 = vadd.f32 %v60, %v65
    %v67 = vlog2.pop %v66
    %v68 = vmul.f32 %v67, 0.6931472
    %v69 = vsub.f32 %v46, %v68
    %70 = vst [vmem:[#allocation5] sm:$0x3] %v69
    // Predicated region
    $region10: #{tpu_custom_call.1} parent=1 // pred_check
      _
    $region11: #{tpu_custom_call.1} parent=1 // pred_check_branch
      %72 = sbr.rel (0) target = $region13
    $region12: #{tpu_custom_call.1} parent=1 // pred_region
      %s74 = ssub.s32 32, 32
      %75 = vsyncadd [#allocation4], %s74
      %s77 = sshll.u32 [#allocation5], 4
      %s78 = int_to_ptr.vmem [resolvable:$true] %s77
      %80 = dma.vmem_to_hbm [thread:$0]  %s78, 32, %s1, [#allocation4]
    $region13: #{tpu_custom_call.1} parent=1 // pred_fallthru
      _
    // Predicated region
    $region14: #{tpu_custom_call.1} parent=1 // pred_check
      _
    $region15: #{tpu_custom_call.1} parent=1 // pred_check_branch
      %82 = sbr.rel (0) target = $region17
    $region16: #{tpu_custom_call.1} parent=1 // pred_region
      %83 = dma.done [#allocation4], 32
    $region17: #{tpu_custom_call.1} parent=1 // pred_fallthru
      _
    %84 = vsyncpa [#allocation3], 1
    %85 = vsyncpa [#allocation4], 1

</llo_original>
